<compile_context>
chip_gen: v6e
topology: v6e:2x2x1
jax: 0.10.0
libtpu: 0.0.40
codegen_flags: <defaults>
</compile_context>

<pallas_src>
import jax
import jax.numpy as jnp
from jax.experimental import pallas as pl
from jax.experimental.pallas import tpu as pltpu


def _vmem_capacity_bytes():
    """Physical VMEM of the current TPU generation; conservative fallback."""
    try:
        return int(pltpu.get_tpu_info().vmem_capacity_bytes)
    except Exception:
        return 64 << 20  # v7x per-TensorCore VMEM (most restrictive)


def _choose_tile_b(B, C, itemsize, vmem_capacity):
    """Batch tile: dtype-sublane aligned, VMEM-budgeted, occupancy-capped."""
    align = max(8, 32 // itemsize)          # f32: 8, bf16: 16, int8/fp8: 32
    if B <= align:
        return B                            # single full-batch tile (full-dim block)
    usable = (vmem_capacity * 3) // 4
    # Double-buffered input tiles (2 arrays) + ~12 live f32 intermediates/row.
    per_row = 2 * 2 * C * itemsize + 12 * C * 4
    max_rows = max(align, usable // per_row)
    # Keep >= ~4 grid steps when possible (2 TCs on v7x + pipelining overlap).
    occ_rows = max(align, (pl.cdiv(B, 4) // align) * align)
    tile = min(B, max_rows, occ_rows, 4096)
    tile = max(align, (tile // align) * align)
    return tile


def _make_jsd_kernel(B, tile_b, C, needs_mask, use_tree):
    def kernel(x_ref, y_ref, out_ref):
        x = x_ref[...].astype(jnp.float32)
        y = y_ref[...].astype(jnp.float32)
        tb = x.shape[0]

        # Shared-exp softmax pieces; no p/logp full-tile temporaries.
        x_sh = x - jnp.max(x, axis=-1, keepdims=True)
        e_x = jnp.exp(x_sh)
        sx = jnp.sum(e_x, axis=-1, keepdims=True)
        y_sh = y - jnp.max(y, axis=-1, keepdims=True)
        e_y = jnp.exp(y_sh)
        sy = jnp.sum(e_y, axis=-1, keepdims=True)

        m = 0.5 * (e_x * (1.0 / sx) + e_y * (1.0 / sy))
        # xlogy convention: 0 * log 0 = 0 (PyTorch kl_div behavior when both
        # softmaxes underflow to exactly 0 at the same class).
        logm = jnp.where(m > 0.0, jnp.log(m), 0.0)

        # 0.5*(logp1 + logp2) = 0.5*(x_sh + y_sh) - 0.5*(log sx + log sy)
        logp_avg = 0.5 * (x_sh + y_sh) - 0.5 * (jnp.log(sx) + jnp.log(sy))
        terms = m * (logm - logp_avg)

        if needs_mask:
            i = pl.program_id(0)
            row = jax.lax.broadcasted_iota(jnp.int32, (tb, 1), 0)
            valid = (i * tile_b + row) < B
            terms = jnp.where(valid, terms, 0.0)

        if use_tree:
            # VPU-only partial reduction to a lane-dense (8,128) block:
            # fold 8-row groups (leading-dim reshape, layout-preserving), then
            # fold 128-lane groups with tile-aligned slices.
            part = jnp.sum(terms.reshape(tb // 8, 8, C), axis=0)   # (8, C)
            acc = part[:, 0:128]
            for j in range(1, C // 128):
                acc = acc + part[:, j * 128:(j + 1) * 128]
            out_ref[...] = acc.reshape(1, 8, 128)
        else:
            partial = jnp.sum(terms)
            out_ref[...] = jnp.full(out_ref.shape, partial, dtype=jnp.float32)

    return kernel


def jsd(net_1_logits, net_2_logits):
    """Pallas JSD with reduction='batchmean'. Inputs: (B, C). Returns scalar f32."""
    assert net_1_logits.shape == net_2_logits.shape
    assert net_1_logits.ndim == 2
    B, C = net_1_logits.shape
    itemsize = jnp.dtype(net_1_logits.dtype).itemsize

    vmem_cap = _vmem_capacity_bytes()
    tile_b = _choose_tile_b(B, C, itemsize, vmem_cap)
    num_tiles = pl.cdiv(B, tile_b)
    needs_mask = (B % tile_b) != 0
    use_tree = (tile_b % 8 == 0) and (C % 128 == 0)

    # VMEM limit: estimated live set, bounded by physical capacity minus headroom.
    est = 2 * 2 * tile_b * C * itemsize + 10 * tile_b * C * 4 + (2 << 20)
    vmem_limit = int(min(vmem_cap - (4 << 20), max(32 << 20, est)))

    cost = pl.CostEstimate(
        flops=14 * B * C,
        transcendentals=3 * B * C,
        bytes_accessed=2 * B * C * itemsize + num_tiles * 8 * 128 * 4,
    )

    kernel = _make_jsd_kernel(B, tile_b, C, needs_mask, use_tree)

    partials = pl.pallas_call(
        kernel,
        out_shape=jax.ShapeDtypeStruct((num_tiles, 8, 128), jnp.float32),
        grid=(num_tiles,),
        in_specs=[
            pl.BlockSpec((tile_b, C), lambda i: (i, 0)),
            pl.BlockSpec((tile_b, C), lambda i: (i, 0)),
        ],
        out_specs=pl.BlockSpec((1, 8, 128), lambda i: (i, 0, 0)),
        compiler_params=pltpu.CompilerParams(
            dimension_semantics=("parallel",),
            vmem_limit_bytes=vmem_limit,
        ),
        cost_estimate=cost,
    )(net_1_logits, net_2_logits)

    # Tiny final reduction + batchmean scale in plain JAX.
    if use_tree:
        return jnp.sum(partials) / B
    return jnp.sum(partials[:, 0, 0]) / B


def _jsd_ref(x, y):
    """Pure-JAX reference (with the same 0*log0=0 convention as torch.kl_div)."""
    logp1 = jax.nn.log_softmax(x.astype(jnp.float32), axis=1)
    logp2 = jax.nn.log_softmax(y.astype(jnp.float32), axis=1)
    p1, p2 = jnp.exp(logp1), jnp.exp(logp2)
    m = 0.5 * (p1 + p2)
    logm = jnp.where(m > 0, jnp.log(jnp.where(m > 0, m, 1.0)), 0.0)
    b = x.shape[0]
    kl1 = jnp.sum(m * (logm - logp1)) / b
    kl2 = jnp.sum(m * (logm - logp2)) / b
    return 0.5 * (kl1 + kl2)


if __name__ == "__main__":
    key = jax.random.PRNGKey(0)
    k1, k2 = jax.random.split(key)

    # Small shapes consistent with the module (2-D logits: batch x classes).
    B, C = 8, 128
    net_1_logits = jax.random.normal(k1, (B, C), dtype=jnp.float32)
    net_2_logits = jax.random.normal(k2, (B, C), dtype=jnp.float32)

    loss = jsd(net_1_logits, net_2_logits)
    jax.block_until_ready(loss)
    ref = _jsd_ref(net_1_logits, net_2_logits)
    assert jnp.allclose(loss, ref, rtol=1e-5, atol=1e-6), (loss, ref)

    # Ragged multi-tile case: exercises >1 grid step, last-tile masking, and
    # the m -> 0 underflow (xlogy) guard.
    B2, C2 = 20, 256
    a = jax.random.normal(k1, (B2, C2), dtype=jnp.float32)
    b = jax.random.normal(k2, (B2, C2), dtype=jnp.float32)
    a = a.at[3, 7].set(-1e4)
    b = b.at[3, 7].set(-1e4)
    loss2 = jsd(a, b)
    jax.block_until_ready(loss2)
    ref2 = _jsd_ref(a, b)
    assert bool(jnp.isfinite(loss2)), loss2
    assert jnp.allclose(loss2, ref2, rtol=1e-5, atol=1e-6), (loss2, ref2)

    # bf16 inputs: exercises the dtype-aware sublane alignment path.
    loss3 = jsd(net_1_logits.astype(jnp.bfloat16), net_2_logits.astype(jnp.bfloat16))
    jax.block_until_ready(loss3)
    ref3 = _jsd_ref(net_1_logits.astype(jnp.bfloat16), net_2_logits.astype(jnp.bfloat16))
    assert jnp.allclose(loss3, ref3, rtol=1e-4, atol=1e-5), (loss3, ref3)

    print("KERNEL_OK")
</pallas_src>

<mosaic_0001>
module attributes {stable_mosaic.version = 11 : i64} {
  func.func @kernel(%arg0: i32, %arg1: memref<8x128xf32, #tpu.memory_space<vmem>>, %arg2: memref<8x128xf32, #tpu.memory_space<vmem>>, %arg3: memref<1x8x128xf32, #tpu.memory_space<vmem>>) attributes {dimension_semantics = [#tpu.dimension_semantics<parallel>], iteration_bounds = array<i64: 1>, scalar_prefetch = 0 : i64, scratch_operands = 0 : i64, tpu.core_type = #tpu.core_type<tc>, window_params = [{transform_indices = @transform_0, window_bounds = array<i64: 8, 128>}, {transform_indices = @transform_1, window_bounds = array<i64: 8, 128>}, {transform_indices = @transform_2, window_bounds = array<i64: 1, 8, 128>}]} {
    %c0 = arith.constant 0 : index
    %c0_0 = arith.constant 0 : index
    %0 = vector.load %arg1[%c0, %c0_0] : memref<8x128xf32, #tpu.memory_space<vmem>>, vector<8x128xf32>
    %c0_1 = arith.constant 0 : index
    %c0_2 = arith.constant 0 : index
    %1 = vector.load %arg2[%c0_1, %c0_2] : memref<8x128xf32, #tpu.memory_space<vmem>>, vector<8x128xf32>
    %cst = arith.constant dense<0xFF800000> : vector<8xf32>
    %2 = vector.multi_reduction <maximumf>, %0, %cst [1] : vector<8x128xf32> to vector<8xf32>
    %3 = vector.shape_cast %2 : vector<8xf32> to vector<8x1xf32>
    %4 = vector.broadcast %3 : vector<8x1xf32> to vector<8x128xf32>
    %5 = arith.subf %0, %4 : vector<8x128xf32>
    %6 = math.exp %5 : vector<8x128xf32>
    %cst_3 = arith.constant dense<0.000000e+00> : vector<8xf32>
    %7 = vector.multi_reduction <add>, %6, %cst_3 [1] : vector<8x128xf32> to vector<8xf32>
    %8 = vector.shape_cast %7 : vector<8xf32> to vector<8x1xf32>
    %cst_4 = arith.constant dense<0xFF800000> : vector<8xf32>
    %9 = vector.multi_reduction <maximumf>, %1, %cst_4 [1] : vector<8x128xf32> to vector<8xf32>
    %10 = vector.shape_cast %9 : vector<8xf32> to vector<8x1xf32>
    %11 = vector.broadcast %10 : vector<8x1xf32> to vector<8x128xf32>
    %12 = arith.subf %1, %11 : vector<8x128xf32>
    %13 = math.exp %12 : vector<8x128xf32>
    %cst_5 = arith.constant dense<0.000000e+00> : vector<8xf32>
    %14 = vector.multi_reduction <add>, %13, %cst_5 [1] : vector<8x128xf32> to vector<8xf32>
    %15 = vector.shape_cast %14 : vector<8xf32> to vector<8x1xf32>
    %cst_6 = arith.constant 1.000000e+00 : f32
    %16 = vector.broadcast %cst_6 : f32 to vector<8x1xf32>
    %17 = arith.divf %16, %8 : vector<8x1xf32>
    %18 = vector.broadcast %17 : vector<8x1xf32> to vector<8x128xf32>
    %19 = arith.mulf %6, %18 : vector<8x128xf32>
    %cst_7 = arith.constant 1.000000e+00 : f32
    %20 = vector.broadcast %cst_7 : f32 to vector<8x1xf32>
    %21 = arith.divf %20, %15 : vector<8x1xf32>
    %22 = vector.broadcast %21 : vector<8x1xf32> to vector<8x128xf32>
    %23 = arith.mulf %13, %22 : vector<8x128xf32>
    %24 = arith.addf %19, %23 : vector<8x128xf32>
    %cst_8 = arith.constant 5.000000e-01 : f32
    %25 = vector.broadcast %cst_8 : f32 to vector<8x128xf32>
    %26 = arith.mulf %25, %24 : vector<8x128xf32>
    %cst_9 = arith.constant 0.000000e+00 : f32
    %27 = vector.broadcast %cst_9 : f32 to vector<8x128xf32>
    %28 = arith.cmpf ogt, %26, %27 : vector<8x128xf32>
    %29 = math.log %26 : vector<8x128xf32>
    %cst_10 = arith.constant 0.000000e+00 : f32
    %30 = vector.broadcast %cst_10 : f32 to vector<8x128xf32>
    %31 = arith.select %28, %29, %30 : vector<8x128xi1>, vector<8x128xf32>
    %32 = arith.addf %5, %12 : vector<8x128xf32>
    %cst_11 = arith.constant 5.000000e-01 : f32
    %33 = vector.broadcast %cst_11 : f32 to vector<8x128xf32>
    %34 = arith.mulf %33, %32 : vector<8x128xf32>
    %35 = math.log %8 : vector<8x1xf32>
    %36 = math.log %15 : vector<8x1xf32>
    %37 = arith.addf %35, %36 : vector<8x1xf32>
    %cst_12 = arith.constant 5.000000e-01 : f32
    %38 = vector.broadcast %cst_12 : f32 to vector<8x1xf32>
    %39 = arith.mulf %38, %37 : vector<8x1xf32>
    %40 = vector.broadcast %39 : vector<8x1xf32> to vector<8x128xf32>
    %41 = arith.subf %34, %40 : vector<8x128xf32>
    %42 = arith.subf %31, %41 : vector<8x128xf32>
    %43 = arith.mulf %26, %42 : vector<8x128xf32>
    %44 = vector.shape_cast %43 : vector<8x128xf32> to vector<1x8x128xf32>
    %cst_13 = arith.constant dense<0.000000e+00> : vector<8x128xf32>
    %45 = vector.multi_reduction <add>, %44, %cst_13 [0] : vector<1x8x128xf32> to vector<8x128xf32>
    %46 = vector.shape_cast %45 : vector<8x128xf32> to vector<1x8x128xf32>
    %c0_14 = arith.constant 0 : index
    %c0_15 = arith.constant 0 : index
    %c0_16 = arith.constant 0 : index
    %47 = vector.load %arg3[%c0_14, %c0_15, %c0_16] : memref<1x8x128xf32, #tpu.memory_space<vmem>>, vector<1x8x128xf32>
    tpu.vector_store %arg3[%c0_14, %c0_15, %c0_16], %46 {strides = array<i32>} : memref<1x8x128xf32, #tpu.memory_space<vmem>>, vector<1x8x128xf32>,
    return
  }
  func.func @transform_0(%arg0: i32) -> (i32, i32) {
    %c0_i32 = arith.constant 0 : i32
    %c0_i32_0 = arith.constant 0 : i32
    return %arg0, %c0_i32 : i32, i32
  }
  func.func @transform_1(%arg0: i32) -> (i32, i32) {
    %c0_i32 = arith.constant 0 : i32
    %c0_i32_0 = arith.constant 0 : i32
    return %arg0, %c0_i32 : i32, i32
  }
  func.func @transform_2(%arg0: i32) -> (i32, i32, i32) {
    %c0_i32 = arith.constant 0 : i32
    %c0_i32_0 = arith.constant 0 : i32
    %c0_i32_1 = arith.constant 0 : i32
    return %arg0, %c0_i32, %c0_i32_0 : i32, i32, i32
  }
}

</mosaic_0001>

<llo_original>
// kernel: tpu_custom_call.1
$region0: #{tpu_custom_call.1}
  #allocation0 [shape = 'u32[]', space=smem, size = 0x4, offset = 0x4, fixed_abs, tag = 'smem constant byte address 0x4 - core index']
  #allocation1 [shape = 'u32[144,128]{1,0:T(1,128)}', space=vmem, size = 0x12000, scoped, tag = 'internal scratch']
  %s0 = inlined_call_operand.hbm [shape: f32[8,128], index: 0, kind: input, shape index: {}]
  %s1 = inlined_call_operand.hbm [shape: f32[8,128], index: 1, kind: input, shape index: {}]
  %s2 = inlined_call_operand.hbm [shape: f32[1,8,128], index: 2, kind: output, shape index: {}]
  %s3 = sld [smem:[#allocation0]]
  $region26: #{tpu_custom_call.1} parent=0
    _
  %s5 = ssub.s32 1, %s3
  %s6 = scalar_select 0, %s5, %s3
  $region1: #{tpu_custom_call.1} parent=0
    #allocation2 [shape = 'u8[4096]{0}', space=vmem, size = 0x1000, scoped, tag = 'input window, operand 0, single buffered']
    #allocation3 [shape = 's32[1]{0}', space=sflag, size = 0x4, scoped, tag = 'scoped memory for tpu_custom_call.1']
    #allocation4 [shape = 's32[1]{0}', space=sflag, size = 0x4, scoped, tag = 'scoped memory for tpu_custom_call.1']
    #allocation5 [shape = 'u8[4096]{0}', space=vmem, size = 0x1000, scoped, tag = 'input window, operand 1, single buffered']
    #allocation6 [shape = 's32[1]{0}', space=sflag, size = 0x4, scoped, tag = 'scoped memory for tpu_custom_call.1']
    #allocation7 [shape = 'u8[4096]{0}', space=vmem, size = 0x1000, scoped, tag = 'output window, operand 0, single buffered']
    %7 = vsyncpa [#allocation3], 0
    %8 = vsyncpa [#allocation6], 0
    %9 = vsyncpa [#allocation4], 0
    // Predicated region
    $region2: #{tpu_custom_call.1} parent=1 // pred_check
      _
    $region3: #{tpu_custom_call.1} parent=1 // pred_check_branch
      %11 = sbr.rel (0) target = $region5
    $region4: #{tpu_custom_call.1} parent=1 // pred_region
      %s13 = ssub.s32 128, 128
      %14 = vsyncadd [#allocation3], %s13
      %s16 = sshll.u32 [#allocation2], 4
      %s17 = int_to_ptr.vmem [resolvable:$true] %s16
      %19 = dma.hbm_to_vmem [thread:$0]  %s0, 128, %s17, [#allocation3]
    $region5: #{tpu_custom_call.1} parent=1 // pred_fallthru
      _
    // Predicated region
    $region6: #{tpu_custom_call.1} parent=1 // pred_check
      _
    $region7: #{tpu_custom_call.1} parent=1 // pred_check_branch
      %21 = sbr.rel (0) target = $region9
    $region8: #{tpu_custom_call.1} parent=1 // pred_region
      %s23 = ssub.s32 128, 128
      %24 = vsyncadd [#allocation6], %s23
      %s26 = sshll.u32 [#allocation5], 4
      %s27 = int_to_ptr.vmem [resolvable:$true] %s26
      %29 = dma.hbm_to_vmem [thread:$0]  %s1, 128, %s27, [#allocation6]
    $region9: #{tpu_custom_call.1} parent=1 // pred_fallthru
      _
    // Predicated region
    $region10: #{tpu_custom_call.1} parent=1 // pred_check
      _
    $region11: #{tpu_custom_call.1} parent=1 // pred_check_branch
      %31 = sbr.rel (0) target = $region13
    $region12: #{tpu_custom_call.1} parent=1 // pred_region
      %32 = dma.done [#allocation3], 128
    $region13: #{tpu_custom_call.1} parent=1 // pred_fallthru
      _
    // Predicated region
    $region14: #{tpu_custom_call.1} parent=1 // pred_check
      _
    $region15: #{tpu_custom_call.1} parent=1 // pred_check_branch
      %34 = sbr.rel (0) target = $region17
    $region16: #{tpu_custom_call.1} parent=1 // pred_region
      %35 = dma.done [#allocation6], 128
    $region17: #{tpu_custom_call.1} parent=1 // pred_fallthru
      _
    %v36 = vld [vmem:[#allocation2] sm:$0xff]
    %v37 = vld [vmem:[#allocation5] sm:$0xff]
    %38 = vmax.xlane.f32.xlu0 %v36
    %v39 = vpop.xlane.xlu0 %38
    %v40 = vsub.f32 %v36, %v39
    %v41 = vmul.f32 %v40, 1.442695
    %v42 = vpow.pop %v41
    %43 = vadd.xlane.f32.xlu0 %v42
    %v44 = vpop.xlane.xlu0 %43
    %45 = vmax.xlane.f32.xlu0 %v37
    %v46 = vpop.xlane.xlu0 %45
    %v47 = vsub.f32 %v37, %v46
    %v48 = vmul.f32 %v47, 1.442695
    %v49 = vpow.pop %v48
    %50 = vadd.xlane.f32.xlu0 %v49
    %v51 = vpop.xlane.xlu0 %50
    %v52 = vrcp.pop %v44
    %v53 = vmul.f32 1.0, %v52
    %v54 = vmul.f32 %v42, %v53
    %v55 = vrcp.pop %v51
    %v56 = vmul.f32 1.0, %v55
    %v57 = vmul.f32 %v49, %v56
    %v58 = vadd.f32 %v54, %v57
    %v59 = vmul.f32 %v58, 0.5
    %vm60 = vcmp.gt.f32.partialorder %v59, 0.0
    %v61 = vlog2.pop %v59
    %v62 = vmul.f32 %v61, 0.6931472
    %v63 = vsel %vm60, %v62, 0.0
    %v64 = vadd.f32 %v40, %v47
    %v65 = vmul.f32 %v64, 0.5
    %v66 = vlog2.pop %v44
    %v67 = vmul.f32 %v66, 0.6931472
    %v68 = vlog2.pop %v51
    %v69 = vmul.f32 %v68, 0.6931472
    %v70 = vadd.f32 %v67, %v69
    %v71 = vmul.f32 %v70, 0.5
    %v72 = vsub.f32 %v65, %v71
    %v73 = vsub.f32 %v63, %v72
    %v74 = vmul.f32 %v59, %v73
    %v75 = vadd.f32 %v74, 0.0
    %76 = vst [vmem:[#allocation7] sm:$0xff] %v75
    // Predicated region
    $region18: #{tpu_custom_call.1} parent=1 // pred_check
      _
    $region19: #{tpu_custom_call.1} parent=1 // pred_check_branch
      %78 = sbr.rel (0) target = $region21
    $region20: #{tpu_custom_call.1} parent=1 // pred_region
      %s80 = ssub.s32 128, 128
      %81 = vsyncadd [#allocation4], %s80
      %s83 = sshll.u32 [#allocation7], 4
      %s84 = int_to_ptr.vmem [resolvable:$true] %s83
      %86 = dma.vmem_to_hbm [thread:$0]  %s84, 128, %s2, [#allocation4]
    $region21: #{tpu_custom_call.1} parent=1 // pred_fallthru
      _
    // Predicated region
    $region22: #{tpu_custom_call.1} parent=1 // pred_check
      _
    $region23: #{tpu_custom_call.1} parent=1 // pred_check_branch
      %88 = sbr.rel (0) target = $region25
    $region24: #{tpu_custom_call.1} parent=1 // pred_region
      %89 = dma.done [#allocation4], 128
    $region25: #{tpu_custom_call.1} parent=1 // pred_fallthru
      _
    %90 = vsyncpa [#allocation3], 1
    %91 = vsyncpa [#allocation6], 1
    %92 = vsyncpa [#allocation4], 1

</llo_original>
